<compile_context>
chip_gen: v5e
topology: v5e:2x2
jax: 0.10.0
libtpu: 0.0.40
codegen_flags: <defaults>
</compile_context>

<pallas_src>
import functools

import jax
import jax.numpy as jnp
from jax import lax
from jax.experimental import pallas as pl
from jax.experimental.pallas import tpu as pltpu


def _sc_cross_attn_kernel(x_ref, w_ref, b_ref, o_ref, s_scr, ch_scr, eye_scr,
                          *, n_valid, tile_n, mxu_dtype):
    """grid = (batch, n_tiles).

    t == 0 : fused pointwise convs, spatial->channel attention, residual
             -> fills s/ch scratch and initializes the resident o_ref block.
    all t  : one tile_n-row slab of the channel->spatial attention, accumulated
             directly into o_ref (output block index constant over t).
    """
    c, n_pad = s_scr.shape
    t = pl.program_id(1)
    scale = jnp.float32(c ** (-0.5))
    inv_scale = jnp.float32(c ** 0.5)
    n_padded_cols = n_pad - n_valid

    # Identity used to relayout the (tile_n, 1) softmax denominators into a
    # lane-oriented (1, tile_n) row via one tiny MXU matmul.  Built once; the
    # scratch persists across the whole grid.
    @pl.when(jnp.logical_and(pl.program_id(0) == 0, t == 0))
    def _():
        rows = lax.broadcasted_iota(jnp.int32, (tile_n, tile_n), 0)
        cols = lax.broadcasted_iota(jnp.int32, (tile_n, tile_n), 1)
        eye_scr[...] = (rows == cols).astype(jnp.float32)

    @pl.when(t == 0)
    def _():
        x = x_ref[0]                                         # (C, Np) f32
        w = w_ref[...].astype(mxu_dtype)                     # (2C, C)
        # Fused pointwise (1x1x1) convs: one MXU pass over x, 2C output rows.
        sc = jnp.dot(w, x.astype(mxu_dtype),
                     preferred_element_type=jnp.float32) + b_ref[...]
        s_f = sc[:c]                                         # spatial_proj(x)
        ch_f = sc[c:]                                        # channel_proj(x)
        if n_padded_cols > 0:
            # Zero padded spatial columns so they drop out of every
            # N-contraction (s2c logits, c2s values / logits).
            col_valid = lax.broadcasted_iota(jnp.int32, (1, n_pad), 1) < n_valid
            s_f = jnp.where(col_valid, s_f, 0.0)
            ch_f = jnp.where(col_valid, ch_f, 0.0)
        # Fold the 1/sqrt(C) logit scale into ch once, in f32 (it multiplies
        # the logits of both attentions); compensate in the tiny s2c weights.
        s_scr[...] = s_f.astype(mxu_dtype)
        ch_scr[...] = (ch_f * scale).astype(mxu_dtype)

        # --- spatial -> channel attention: (C, C) logits, contract the N axes
        # directly (no transpose materialized).
        s_m = s_scr[...]
        ch_m = ch_scr[...]                                   # holds scale * ch
        logits = lax.dot_general(s_m, ch_m, (((1,), (1,)), ((), ())),
                                 preferred_element_type=jnp.float32)
        logits = logits - jnp.max(logits, axis=-1, keepdims=True)
        e = jnp.exp(logits)
        p = e / jnp.sum(e, axis=-1, keepdims=True)           # exact; (C, C) tiny
        # p @ ch == (p * sqrt(C)) @ (scale * ch)
        out_s2c = jnp.dot((p * inv_scale).astype(mxu_dtype), ch_m,
                          preferred_element_type=jnp.float32)
        # Initialize the resident output accumulator: s2c output + residual.
        o_ref[0] = (out_s2c + x).astype(o_ref.dtype)

    # --- channel -> spatial attention: one tile_n-row slab of N per grid step.
    start = pl.multiple_of(t * tile_n, tile_n)
    ch_t = ch_scr[:, pl.ds(start, tile_n)]                   # (C, tn), pre-scaled
    z = lax.dot_general(ch_t, s_scr[...], (((0,), (0,)), ((), ())),
                        preferred_element_type=jnp.float32)  # (tn, Np) logits
    z_max = jnp.max(z, axis=-1, keepdims=True)
    e_z = jnp.exp(z - z_max)
    denom = jnp.sum(e_z, axis=-1, keepdims=True)             # (tn, 1)
    if n_padded_cols > 0:
        # Padded key columns have logits exactly 0 (their s columns are zero),
        # so each one adds exp(-z_max) to the row sum.  Subtract them instead
        # of masking the whole (tile_n, n_pad) block: O(tile_n) work.
        denom = denom - jnp.float32(n_padded_cols) * jnp.exp(-z_max)
        denom = jnp.maximum(denom, jnp.float32(1e-30))
    # Relayout (tn, 1) -> (1, tn) with one tiny MXU matmul against the
    # identity, then fold the softmax normalization into the SMALL operand:
    #   contrib[c, m] = sum_n s[c, n] * r[n] * e_z[n, m]
    denom_row = lax.dot_general(denom, eye_scr[...], (((0,), (0,)), ((), ())),
                                preferred_element_type=jnp.float32)   # (1, tn)
    r_row = pl.reciprocal(denom_row, approx=True)
    s_t = s_scr[:, pl.ds(start, tile_n)]                      # (C, tn)
    s_t_scaled = (s_t.astype(jnp.float32) * r_row).astype(mxu_dtype)
    contrib = lax.dot_general(s_t_scaled, e_z.astype(mxu_dtype),
                              (((1,), (0,)), ((), ())),
                              preferred_element_type=jnp.float32)     # (C, Np)
    o_ref[0] += contrib.astype(o_ref.dtype)


def _pick_tiling(c, n_pad, mxu_bytes):
    """Pick the c2s row-tile size and VMEM limit from the chip's VMEM capacity."""
    try:
        vmem_cap = pltpu.get_tpu_info().vmem_capacity_bytes
    except Exception:
        vmem_cap = 64 * 1024 * 1024           # conservative default (v7x per-TC)
    budget = int(vmem_cap * 0.55)             # headroom for pipelining / temps
    # Resident bytes: x + out blocks (double-buffered f32), s/ch scratch, misc.
    fixed = c * n_pad * (16 + 2 * mxu_bytes + 8)
    tile = 128
    for cand in (1024, 512, 256):             # prefer big tiles (v5e/v6e)
        if cand <= n_pad and n_pad % cand == 0:
            transient = cand * n_pad * (8 + mxu_bytes) + cand * cand * 4
            if fixed + transient <= budget:
                tile = cand
                break
    tile = min(tile, n_pad)
    vmem_limit = min(int(vmem_cap * 0.8), 100 * 1024 * 1024)
    return tile, vmem_limit


def spatial_channel_cross_attention(x, w_spatial, b_spatial, w_channel, b_channel,
                                    *, mxu_dtype=jnp.bfloat16):
    """Forward of SpatialChannelCrossAttention.

    x: (b, c, d, h, w) float32.  w_*: (c, c) pointwise-conv weights (squeezed
    from (c, c, 1, 1, 1)).  b_*: (c,).
    mxu_dtype: MXU operand dtype.  bf16 (default) is right on v5e/v6e/v7x —
    the MXU is natively bf16 on all three; jnp.float32 is an accuracy option.
    Accumulation is always f32.
    """
    b, c, d, h, w = x.shape
    n = d * h * w
    n_pad = ((n + 127) // 128) * 128                      # lane-dense stores
    mxu_bytes = jnp.dtype(mxu_dtype).itemsize
    tile_n, vmem_limit = _pick_tiling(c, n_pad, mxu_bytes)
    n_tiles = n_pad // tile_n

    # TODO(synk): optionally cast x to bf16 here (halves the input block /
    # HBM traffic, most useful on v7x) at the cost of a bf16 residual add.
    x_flat = x.reshape(b, c, n).astype(jnp.float32)
    if n_pad != n:
        x_flat = jnp.pad(x_flat, ((0, 0), (0, 0), (0, n_pad - n)))
    # Fused pointwise-conv parameters: one (2C, C) matmul instead of two (C, C).
    w_stacked = jnp.concatenate([w_spatial, w_channel], axis=0).astype(jnp.float32)
    b_stacked = jnp.concatenate([b_spatial, b_channel], axis=0)
    b_stacked = b_stacked.reshape(2 * c, 1).astype(jnp.float32)

    kernel = functools.partial(_sc_cross_attn_kernel, n_valid=n, tile_n=tile_n,
                               mxu_dtype=mxu_dtype)

    out_flat = pl.pallas_call(
        kernel,
        out_shape=jax.ShapeDtypeStruct((b, c, n_pad), x.dtype),
        grid_spec=pltpu.PrefetchScalarGridSpec(
            num_scalar_prefetch=0,
            grid=(b, n_tiles),                       # reduction axis (tiles) last
            in_specs=[
                pl.BlockSpec((1, c, n_pad), lambda i, t: (i, 0, 0)),   # x (resident over t)
                pl.BlockSpec((2 * c, c), lambda i, t: (0, 0)),         # stacked weights
                pl.BlockSpec((2 * c, 1), lambda i, t: (0, 0)),         # stacked biases
            ],
            out_specs=pl.BlockSpec((1, c, n_pad), lambda i, t: (i, 0, 0)),
            scratch_shapes=[
                pltpu.VMEM((c, n_pad), mxu_dtype),          # s  = spatial_proj(x)
                pltpu.VMEM((c, n_pad), mxu_dtype),          # ch = scale * channel_proj(x)
                pltpu.VMEM((tile_n, tile_n), jnp.float32),  # identity (denom relayout)
            ],
        ),
        compiler_params=pltpu.CompilerParams(
            # Batch is parallel (megacore-shardable); tile axis is a reduction
            # into the resident output block.  Note: with B == 1 one v7x core
            # idles — batch >= 2 is preferred there.
            dimension_semantics=("parallel", "arbitrary"),
            vmem_limit_bytes=vmem_limit,
        ),
    )(x_flat, w_stacked, b_stacked)

    if n_pad != n:
        out_flat = out_flat[:, :, :n]
    return out_flat.reshape(b, c, d, h, w)


def _reference(x, w_spatial, b_spatial, w_channel, b_channel):
    """Pure-JAX mirror of the PyTorch forward (correctness check)."""
    b, c, d, h, w = x.shape
    n = d * h * w
    scale = c ** (-0.5)
    xf = x.reshape(b, c, n)
    s = jnp.einsum("oc,bcn->bon", w_spatial, xf) + b_spatial[None, :, None]
    ch = jnp.einsum("oc,bcn->bon", w_channel, xf) + b_channel[None, :, None]
    attn_s2c = jax.nn.softmax(jnp.einsum("bcn,bkn->bck", s, ch) * scale, axis=-1)
    out_s2c = jnp.einsum("bck,bkn->bcn", attn_s2c, ch)
    attn_c2s = jax.nn.softmax(jnp.einsum("bcn,bcm->bnm", ch, s) * scale, axis=-1)
    out_c2s = jnp.einsum("bcn,bnm->bcm", s, attn_c2s)
    out = (out_s2c + out_c2s).reshape(b, c, d, h, w)
    return out + x


if __name__ == "__main__":
    key = jax.random.PRNGKey(0)
    k_x, k_ws, k_bs, k_wc, k_bc = jax.random.split(key, 5)

    # N = 4*4*4 = 64 -> padded to 128 inside the wrapper (exercises the padded
    # column handling / denominator correction).
    B, C, D, H, W = 2, 8, 4, 4, 4

    x = jax.random.normal(k_x, (B, C, D, H, W), dtype=jnp.float32)
    # Conv3d(kernel_size=1) weights have shape (C, C, 1, 1, 1); keep the
    # squeezed (C, C) pointwise matrix.  Deterministic synthetic init.
    bound = 1.0 / (C ** 0.5)
    w_spatial = jax.random.uniform(k_ws, (C, C), jnp.float32, -bound, bound)
    b_spatial = jax.random.uniform(k_bs, (C,), jnp.float32, -bound, bound)
    w_channel = jax.random.uniform(k_wc, (C, C), jnp.float32, -bound, bound)
    b_channel = jax.random.uniform(k_bc, (C,), jnp.float32, -bound, bound)

    ref = _reference(x, w_spatial, b_spatial, w_channel, b_channel)

    # bf16 MXU operands, f32 accumulation (default; right on v5e/v6e/v7x).
    out_bf16 = spatial_channel_cross_attention(
        x, w_spatial, b_spatial, w_channel, b_channel, mxu_dtype=jnp.bfloat16)
    out_bf16 = jax.block_until_ready(out_bf16)
    assert out_bf16.shape == (B, C, D, H, W)
    assert jnp.allclose(out_bf16, ref, atol=1e-1, rtol=1e-1), "bf16 path mismatch"

    # f32 MXU operands (accuracy option); approx reciprocal in the c2s softmax
    # only => modest tolerance.
    out_f32 = spatial_channel_cross_attention(
        x, w_spatial, b_spatial, w_channel, b_channel, mxu_dtype=jnp.float32)
    out_f32 = jax.block_until_ready(out_f32)
    assert out_f32.shape == (B, C, D, H, W)
    assert jnp.allclose(out_f32, ref, atol=2e-2, rtol=2e-2), "f32 path mismatch"

    print("KERNEL_OK")
</pallas_src>

<mosaic_0001>
module attributes {stable_mosaic.version = 11 : i64} {
  func.func @_sc_cross_attn_kernel(%arg0: i32, %arg1: i32, %arg2: memref<1x8x128xf32, #tpu.memory_space<vmem>>, %arg3: memref<16x8xf32, #tpu.memory_space<vmem>>, %arg4: memref<16x1xf32, #tpu.memory_space<vmem>>, %arg5: memref<1x8x128xf32, #tpu.memory_space<vmem>>, %arg6: memref<8x128xbf16, #tpu.memory_space<vmem>>, %arg7: memref<8x128xbf16, #tpu.memory_space<vmem>>, %arg8: memref<128x128xf32, #tpu.memory_space<vmem>>) attributes {dimension_semantics = [#tpu.dimension_semantics<parallel>, #tpu.dimension_semantics<arbitrary>], iteration_bounds = array<i64: 2, 1>, scalar_prefetch = 0 : i64, scratch_operands = 3 : i64, tpu.core_type = #tpu.core_type<tc>, window_params = [{transform_indices = @transform_0, window_bounds = array<i64: 1, 8, 128>}, {pipeline_mode = #tpu.pipeline_mode<synchronous>, transform_indices = @transform_1, window_bounds = array<i64: 16, 8>}, {pipeline_mode = #tpu.pipeline_mode<synchronous>, transform_indices = @transform_2, window_bounds = array<i64: 16, 1>}, {transform_indices = @transform_3, window_bounds = array<i64: 1, 8, 128>}]} {
    %c0_i32 = arith.constant 0 : i32
    %0 = arith.cmpi eq, %arg0, %c0_i32 : i32
    %c0_i32_0 = arith.constant 0 : i32
    %1 = arith.cmpi eq, %arg1, %c0_i32_0 : i32
    %2 = arith.andi %0, %1 : i1
    %3 = arith.extui %2 : i1 to i32
    %c0_i32_1 = arith.constant 0 : i32
    %4 = arith.cmpi ne, %3, %c0_i32_1 : i32
    scf.if %4 {
      %46 = tpu.iota {dimensions = array<i32: 0>} : vector<128x128xi32>
      %47 = tpu.iota {dimensions = array<i32: 1>} : vector<128x128xi32>
      %48 = arith.cmpi eq, %46, %47 : vector<128x128xi32>
      %49 = arith.extui %48 : vector<128x128xi1> to vector<128x128xi32>
      %50 = arith.sitofp %49 : vector<128x128xi32> to vector<128x128xf32>
      %c0_24 = arith.constant 0 : index
      %c0_25 = arith.constant 0 : index
      %51 = vector.load %arg8[%c0_24, %c0_25] : memref<128x128xf32, #tpu.memory_space<vmem>>, vector<128x128xf32>
      tpu.vector_store %arg8[%c0_24, %c0_25], %50 {strides = array<i32>} : memref<128x128xf32, #tpu.memory_space<vmem>>, vector<128x128xf32>,
    } else {
    }
    %c0_i32_2 = arith.constant 0 : i32
    %5 = arith.cmpi eq, %arg1, %c0_i32_2 : i32
    %6 = arith.extui %5 : i1 to i32
    %cst = arith.constant 0.353553385 : f32
    %cst_3 = arith.constant 2.82842708 : f32
    %c0_i32_4 = arith.constant 0 : i32
    %7 = arith.cmpi ne, %6, %c0_i32_4 : i32
    scf.if %7 {
      %c0_24 = arith.constant 0 : index
      %c0_25 = arith.constant 0 : index
      %c0_26 = arith.constant 0 : index
      %46 = vector.load %arg2[%c0_24, %c0_25, %c0_26] : memref<1x8x128xf32, #tpu.memory_space<vmem>>, vector<1x8x128xf32>
      %47 = vector.shape_cast %46 : vector<1x8x128xf32> to vector<8x128xf32>
      %c0_27 = arith.constant 0 : index
      %c0_28 = arith.constant 0 : index
      %48 = vector.load %arg3[%c0_27, %c0_28] : memref<16x8xf32, #tpu.memory_space<vmem>>, vector<16x8xf32>
      %49 = arith.truncf %48 : vector<16x8xf32> to vector<16x8xbf16>
      %50 = arith.truncf %47 : vector<8x128xf32> to vector<8x128xbf16>
      %cst_29 = arith.constant dense<0.000000e+00> : vector<16x128xf32>
      %51 = tpu.matmul %49, %50, %cst_29 {dimension_numbers = #tpu.dot_dimension_numbers<[1], [0], [0], [1], [0, 0, 1, 1], [], []>} : vector<16x8xbf16>, vector<8x128xbf16>, vector<16x128xf32> -> vector<16x128xf32>
      %c0_30 = arith.constant 0 : index
      %c0_31 = arith.constant 0 : index
      %52 = vector.load %arg4[%c0_30, %c0_31] : memref<16x1xf32, #tpu.memory_space<vmem>>, vector<16x1xf32>
      %53 = vector.broadcast %52 : vector<16x1xf32> to vector<16x128xf32>
      %54 = arith.addf %51, %53 : vector<16x128xf32>
      %55 = vector.extract_strided_slice %54 {offsets = [0, 0], sizes = [8, 128], strides = [1, 1]} : vector<16x128xf32> to vector<8x128xf32>
      %56 = vector.extract_strided_slice %54 {offsets = [8, 0], sizes = [8, 128], strides = [1, 1]} : vector<16x128xf32> to vector<8x128xf32>
      %57 = tpu.iota {dimensions = array<i32: 1>} : vector<1x128xi32>
      %c64_i32 = arith.constant 64 : i32
      %58 = vector.broadcast %c64_i32 : i32 to vector<1x128xi32>
      %59 = arith.cmpi slt, %57, %58 : vector<1x128xi32>
      %cst_32 = arith.constant 0.000000e+00 : f32
      %60 = vector.shape_cast %59 : vector<1x128xi1> to vector<1x128xi1>
      %61 = vector.broadcast %60 : vector<1x128xi1> to vector<8x128xi1>
      %62 = vector.broadcast %cst_32 : f32 to vector<8x128xf32>
      %63 = arith.select %61, %55, %62 : vector<8x128xi1>, vector<8x128xf32>
      %cst_33 = arith.constant 0.000000e+00 : f32
      %64 = vector.shape_cast %59 : vector<1x128xi1> to vector<1x128xi1>
      %65 = vector.broadcast %64 : vector<1x128xi1> to vector<8x128xi1>
      %66 = vector.broadcast %cst_33 : f32 to vector<8x128xf32>
      %67 = arith.select %65, %56, %66 : vector<8x128xi1>, vector<8x128xf32>
      %68 = arith.truncf %63 : vector<8x128xf32> to vector<8x128xbf16>
      %c0_34 = arith.constant 0 : index
      %c0_35 = arith.constant 0 : index
      %69 = vector.load %arg6[%c0_34, %c0_35] : memref<8x128xbf16, #tpu.memory_space<vmem>>, vector<8x128xbf16>
      tpu.vector_store %arg6[%c0_34, %c0_35], %68 {strides = array<i32>} : memref<8x128xbf16, #tpu.memory_space<vmem>>, vector<8x128xbf16>,
      %70 = vector.broadcast %cst : f32 to vector<8x128xf32>
      %71 = arith.mulf %67, %70 : vector<8x128xf32>
      %72 = arith.truncf %71 : vector<8x128xf32> to vector<8x128xbf16>
      %c0_36 = arith.constant 0 : index
      %c0_37 = arith.constant 0 : index
      %73 = vector.load %arg7[%c0_36, %c0_37] : memref<8x128xbf16, #tpu.memory_space<vmem>>, vector<8x128xbf16>
      tpu.vector_store %arg7[%c0_36, %c0_37], %72 {strides = array<i32>} : memref<8x128xbf16, #tpu.memory_space<vmem>>, vector<8x128xbf16>,
      %c0_38 = arith.constant 0 : index
      %c0_39 = arith.constant 0 : index
      %74 = vector.load %arg6[%c0_38, %c0_39] : memref<8x128xbf16, #tpu.memory_space<vmem>>, vector<8x128xbf16>
      %c0_40 = arith.constant 0 : index
      %c0_41 = arith.constant 0 : index
      %75 = vector.load %arg7[%c0_40, %c0_41] : memref<8x128xbf16, #tpu.memory_space<vmem>>, vector<8x128xbf16>
      %cst_42 = arith.constant dense<0.000000e+00> : vector<8x8xf32>
      %76 = tpu.matmul %74, %75, %cst_42 {dimension_numbers = #tpu.dot_dimension_numbers<[1], [1], [0], [0], [0, 0, 1, 0], [], []>} : vector<8x128xbf16>, vector<8x128xbf16>, vector<8x8xf32> -> vector<8x8xf32>
      %cst_43 = arith.constant dense<0xFF800000> : vector<8xf32>
      %77 = vector.multi_reduction <maximumf>, %76, %cst_43 [1] : vector<8x8xf32> to vector<8xf32>
      %78 = vector.shape_cast %77 : vector<8xf32> to vector<8x1xf32>
      %79 = vector.broadcast %78 : vector<8x1xf32> to vector<8x8xf32>
      %80 = arith.subf %76, %79 : vector<8x8xf32>
      %81 = math.exp %80 : vector<8x8xf32>
      %cst_44 = arith.constant dense<0.000000e+00> : vector<8xf32>
      %82 = vector.multi_reduction <add>, %81, %cst_44 [1] : vector<8x8xf32> to vector<8xf32>
      %83 = vector.shape_cast %82 : vector<8xf32> to vector<8x1xf32>
      %84 = vector.broadcast %83 : vector<8x1xf32> to vector<8x8xf32>
      %85 = arith.divf %81, %84 : vector<8x8xf32>
      %86 = vector.broadcast %cst_3 : f32 to vector<8x8xf32>
      %87 = arith.mulf %85, %86 : vector<8x8xf32>
      %88 = arith.truncf %87 : vector<8x8xf32> to vector<8x8xbf16>
      %cst_45 = arith.constant dense<0.000000e+00> : vector<8x128xf32>
      %89 = tpu.matmul %88, %75, %cst_45 {dimension_numbers = #tpu.dot_dimension_numbers<[1], [0], [0], [1], [0, 0, 1, 1], [], []>} : vector<8x8xbf16>, vector<8x128xbf16>, vector<8x128xf32> -> vector<8x128xf32>
      %90 = arith.addf %89, %47 : vector<8x128xf32>
      %c0_46 = arith.constant 0 : index
      %c0_47 = arith.constant 0 : index
      %c0_48 = arith.constant 0 : index
      %91 = vector.load %arg5[%c0_46, %c0_47, %c0_48] : memref<1x8x128xf32, #tpu.memory_space<vmem>>, vector<1x8x128xf32>
      %92 = vector.shape_cast %91 : vector<1x8x128xf32> to vector<8x128xf32>
      %93 = vector.shape_cast %90 : vector<8x128xf32> to vector<1x8x128xf32>
      tpu.vector_store %arg5[%c0_46, %c0_47, %c0_48], %93 {strides = array<i32>} : memref<1x8x128xf32, #tpu.memory_space<vmem>>, vector<1x8x128xf32>,
    } else {
    }
    %c128_i32 = arith.constant 128 : i32
    %8 = arith.muli %arg1, %c128_i32 : i32
    %9 = tpu.assume_multiple %8, 128 : i32
    %c0 = arith.constant 0 : index
    %10 = arith.index_cast %9 : i32 to index
    %11 = vector.load %arg7[%c0, %10] : memref<8x128xbf16, #tpu.memory_space<vmem>>, vector<8x128xbf16>
    %c0_5 = arith.constant 0 : index
    %c0_6 = arith.constant 0 : index
    %12 = vector.load %arg6[%c0_5, %c0_6] : memref<8x128xbf16, #tpu.memory_space<vmem>>, vector<8x128xbf16>
    %cst_7 = arith.constant dense<0.000000e+00> : vector<128x128xf32>
    %13 = tpu.matmul %11, %12, %cst_7 {dimension_numbers = #tpu.dot_dimension_numbers<[0], [0], [1], [1], [0, 1, 1, 1], [], []>} : vector<8x128xbf16>, vector<8x128xbf16>, vector<128x128xf32> -> vector<128x128xf32>
    %cst_8 = arith.constant dense<0xFF800000> : vector<128xf32>
    %14 = vector.multi_reduction <maximumf>, %13, %cst_8 [1] : vector<128x128xf32> to vector<128xf32>
    %15 = vector.shape_cast %14 : vector<128xf32> to vector<128x1xf32>
    %16 = vector.broadcast %15 : vector<128x1xf32> to vector<128x128xf32>
    %17 = arith.subf %13, %16 : vector<128x128xf32>
    %18 = math.exp %17 : vector<128x128xf32>
    %cst_9 = arith.constant dense<0.000000e+00> : vector<128xf32>
    %19 = vector.multi_reduction <add>, %18, %cst_9 [1] : vector<128x128xf32> to vector<128xf32>
    %20 = vector.shape_cast %19 : vector<128xf32> to vector<128x1xf32>
    %cst_10 = arith.constant 0.000000e+00 : f32
    %21 = vector.broadcast %cst_10 : f32 to vector<128x1xf32>
    %22 = arith.subf %21, %15 : vector<128x1xf32>
    %23 = math.exp %22 : vector<128x1xf32>
    %cst_11 = arith.constant 6.400000e+01 : f32
    %24 = vector.broadcast %cst_11 : f32 to vector<128x1xf32>
    %25 = arith.mulf %24, %23 : vector<128x1xf32>
    %26 = arith.subf %20, %25 : vector<128x1xf32>
    %cst_12 = arith.constant 1.000000e-30 : f32
    %27 = vector.broadcast %cst_12 : f32 to vector<128x1xf32>
    %28 = arith.maximumf %26, %27 : vector<128x1xf32>
    %c0_13 = arith.constant 0 : index
    %c0_14 = arith.constant 0 : index
    %29 = vector.load %arg8[%c0_13, %c0_14] : memref<128x128xf32, #tpu.memory_space<vmem>>, vector<128x128xf32>
    %cst_15 = arith.constant dense<0.000000e+00> : vector<1x128xf32>
    %30 = tpu.matmul %28, %29, %cst_15 {dimension_numbers = #tpu.dot_dimension_numbers<[0], [0], [1], [1], [0, 1, 1, 1], [], []>} : vector<128x1xf32>, vector<128x128xf32>, vector<1x128xf32> -> vector<1x128xf32>
    %31 = tpu.reciprocal %30 {approx = true} : vector<1x128xf32> -> vector<1x128xf32>
    %c0_16 = arith.constant 0 : index
    %32 = arith.index_cast %9 : i32 to index
    %33 = vector.load %arg6[%c0_16, %32] : memref<8x128xbf16, #tpu.memory_space<vmem>>, vector<8x128xbf16>
    %34 = arith.extf %33 : vector<8x128xbf16> to vector<8x128xf32>
    %35 = vector.broadcast %31 : vector<1x128xf32> to vector<8x128xf32>
    %36 = arith.mulf %34, %35 : vector<8x128xf32>
    %37 = arith.truncf %36 : vector<8x128xf32> to vector<8x128xbf16>
    %38 = arith.truncf %18 : vector<128x128xf32> to vector<128x128xbf16>
    %cst_17 = arith.constant dense<0.000000e+00> : vector<8x128xf32>
    %39 = tpu.matmul %37, %38, %cst_17 {dimension_numbers = #tpu.dot_dimension_numbers<[1], [0], [0], [1], [0, 0, 1, 1], [], []>} : vector<8x128xbf16>, vector<128x128xbf16>, vector<8x128xf32> -> vector<8x128xf32>
    %c0_18 = arith.constant 0 : index
    %c0_19 = arith.constant 0 : index
    %c0_20 = arith.constant 0 : index
    %40 = vector.load %arg5[%c0_18, %c0_19, %c0_20] : memref<1x8x128xf32, #tpu.memory_space<vmem>>, vector<1x8x128xf32>
    %41 = vector.shape_cast %40 : vector<1x8x128xf32> to vector<8x128xf32>
    %42 = arith.addf %41, %39 : vector<8x128xf32>
    %c0_21 = arith.constant 0 : index
    %c0_22 = arith.constant 0 : index
    %c0_23 = arith.constant 0 : index
    %43 = vector.load %arg5[%c0_21, %c0_22, %c0_23] : memref<1x8x128xf32, #tpu.memory_space<vmem>>, vector<1x8x128xf32>
    %44 = vector.shape_cast %43 : vector<1x8x128xf32> to vector<8x128xf32>
    %45 = vector.shape_cast %42 : vector<8x128xf32> to vector<1x8x128xf32>
    tpu.vector_store %arg5[%c0_21, %c0_22, %c0_23], %45 {strides = array<i32>} : memref<1x8x128xf32, #tpu.memory_space<vmem>>, vector<1x8x128xf32>,
    return
  }
  func.func @transform_0(%arg0: i32, %arg1: i32) -> (i32, i32, i32) {
    %c0_i32 = arith.constant 0 : i32
    %c0_i32_0 = arith.constant 0 : i32
    %c0_i32_1 = arith.constant 0 : i32
    return %arg0, %c0_i32, %c0_i32_0 : i32, i32, i32
  }
  func.func @transform_1(%arg0: i32, %arg1: i32) -> (i32, i32) {
    %c0_i32 = arith.constant 0 : i32
    %c0_i32_0 = arith.constant 0 : i32
    %c0_i32_1 = arith.constant 0 : i32
    return %c0_i32, %c0_i32_0 : i32, i32
  }
  func.func @transform_2(%arg0: i32, %arg1: i32) -> (i32, i32) {
    %c0_i32 = arith.constant 0 : i32
    %c0_i32_0 = arith.constant 0 : i32
    %c0_i32_1 = arith.constant 0 : i32
    return %c0_i32, %c0_i32_0 : i32, i32
  }
  func.func @transform_3(%arg0: i32, %arg1: i32) -> (i32, i32, i32) {
    %c0_i32 = arith.constant 0 : i32
    %c0_i32_0 = arith.constant 0 : i32
    %c0_i32_1 = arith.constant 0 : i32
    return %arg0, %c0_i32, %c0_i32_0 : i32, i32, i32
  }
}

</mosaic_0001>

<llo_original>
// kernel: tpu_custom_call.1
$region0: #{tpu_custom_call.1}
  #allocation0 [shape = 'u32[]', space=smem, size = 0x4, offset = 0x4, fixed_abs, tag = 'smem constant byte address 0x4 - core index']
  #allocation1 [shape = 'u32[72,128]{1,0:T(1,128)}', space=vmem, size = 0x9000, scoped, tag = 'internal scratch']
  #allocation2 [shape = 'bf16[8,128]{1,0:T(8,128)(2,1)}', space=vmem, size = 0x800, scoped, tag = 'scratch operand']
  #allocation3 [shape = 'bf16[8,128]{1,0:T(8,128)(2,1)}', space=vmem, size = 0x800, scoped, tag = 'scratch operand']
  #allocation4 [shape = 'f32[128,128]{1,0:T(8,128)}', space=vmem, size = 0x10000, scoped, tag = 'scratch operand']
  %s0 = inlined_call_operand.vmem [shape: f32[2,8,128], index: 0, kind: input, shape index: {}]
  %s1 = inlined_call_operand.vmem [shape: f32[16,8], index: 1, kind: input, shape index: {}]
  %s2 = inlined_call_operand.vmem [shape: f32[16,1], index: 2, kind: input, shape index: {}]
  %s3 = inlined_call_operand.hbm [shape: f32[2,8,128], index: 3, kind: output, shape index: {}]
  %s4 = sld [smem:[#allocation0]]
  $region53: #{tpu_custom_call.1} parent=0
    _
  %s6 = ssub.s32 1, %s4
  %s7 = scalar_select 0, %s6, %s4
  $region1: #{tpu_custom_call.1} parent=0
    #allocation5 [shape = 'u8[8192]{0}', space=vmem, size = 0x2000, scoped, tag = 'output window, operand 0']
    #allocation6 [shape = 's32[2]{0}', space=sflag, size = 0x8, scoped, tag = 'scoped memory for tpu_custom_call.1']
    %8 = vsyncpa [#allocation6], 0
    %s9 = scalar_lea.sflag [#allocation6], 1
    %10 = vsyncpa %s9, 0
    loop: start=0, step=1, limit=4
    $region2: #{tpu_custom_call.1} parent=1 // loop_pre_header
      _
    $region3: #{tpu_custom_call.1} parent=1 // loop_header
      %s12 = sphi 0, %s16
      %p13 = scmp.ge.s32.totalorder %s12, 4
      %s19 = sphi 0, %s31
      %s20 = sphi 0, %s27
      %s21 = sphi 0, %s19
      %s22 = sphi 0, %s20
      %s23 = sphi 0, %s21
      %s24 = sphi 0, %s22
      %s34 = sphi 0, %s36
      %s37 = sphi 0, %s34
      %s38 = sphi 0, %s37
      %s54 = sphi 0, %s38
      %s58 = sphi 0, %s58
      %s60 = sphi 0, %s58
      %s61 = sphi 0, %s60
      %s75 = sphi 0, %s61
      %s79 = sphi 0, %s79
      %s81 = sphi 0, %s79
      %s82 = sphi 0, %s81
      %s96 = sphi 0, %s82
      %s102 = sphi 0, %s104
      %s105 = sphi 0, %s102
      %s106 = sphi 0, %s105
      %s122 = sphi 0, %s106
    $region4: #{tpu_custom_call.1} parent=1 // loop_header_branch
      %15 = sbr.rel (%p13) target = $region8
    $region5: #{tpu_custom_call.1} parent=1 // loop_body
      %s17 = ssub.s32 %s12, 1
      %s18 = ssub.s32 %s12, 2
      %s25 = sadd.s32 1, %s20
      %p26 = scmp.ge.s32.totalorder %s25, 1
      %s27 = scalar_select %p26, 0, %s25
      %s28 = sadd.s32 1, %s19
      %s29 = scalar_select %p26, %s28, %s19
      %p30 = scmp.ge.s32.totalorder %s29, 2
      %s31 = scalar_select %p30, 0, %s29
      %s32 = ssub.s32 %s19, %s31
      %p33 = scmp.eq.s32.totalorder %s32, 0
      %s35 = sadd.s32 %s34, 1
      %s36 = scalar_select %p33, %s34, %s35
      %p39 = pneg %p33
      %p40 = scmp.eq.s32.totalorder %s12, 1
      %p41 = por %p39, %p40
      %p42 = scmp.ne.s32.totalorder %s34, %s37
      %p43 = scmp.eq.s32.totalorder %s12, 0
      %p44 = por %p42, %p43
      %p45 = scmp.ne.s32.totalorder %s34, %s37
      %p46 = scmp.eq.s32.totalorder %s17, 1
      %p47 = por %p45, %p46
      %p48 = scmp.ne.s32.totalorder %s37, %s38
      %p49 = scmp.eq.s32.totalorder %s17, 0
      %p50 = por %p48, %p49
      %p51 = scmp.ne.s32.totalorder %s37, %s38
      %p52 = scmp.eq.s32.totalorder %s18, 1
      %p53 = por %p51, %p52
      %p55 = scmp.ne.s32.totalorder %s38, %s54
      %p56 = scmp.eq.s32.totalorder %s18, 0
      %p57 = por %p55, %p56
      %s59 = sadd.s32 %s58, 1
      %p62 = scmp.eq.s32.totalorder %s12, 1
      %p63 = scmp.ne.s32.totalorder %s58, %s60
      %p64 = scmp.eq.s32.totalorder %s12, 0
      %p65 = por %p63, %p64
      %p66 = scmp.ne.s32.totalorder %s58, %s60
      %p67 = scmp.eq.s32.totalorder %s17, 1
      %p68 = por %p66, %p67
      %p69 = scmp.ne.s32.totalorder %s60, %s61
      %p70 = scmp.eq.s32.totalorder %s17, 0
      %p71 = por %p69, %p70
      %p72 = scmp.ne.s32.totalorder %s60, %s61
      %p73 = scmp.eq.s32.totalorder %s18, 1
      %p74 = por %p72, %p73
      %p76 = scmp.ne.s32.totalorder %s61, %s75
      %p77 = scmp.eq.s32.totalorder %s18, 0
      %p78 = por %p76, %p77
      %s80 = sadd.s32 %s79, 1
      %p83 = scmp.eq.s32.totalorder %s12, 1
      %p84 = scmp.ne.s32.totalorder %s79, %s81
      %p85 = scmp.eq.s32.totalorder %s12, 0
      %p86 = por %p84, %p85
      %p87 = scmp.ne.s32.totalorder %s79, %s81
      %p88 = scmp.eq.s32.totalorder %s17, 1
      %p89 = por %p87, %p88
      %p90 = scmp.ne.s32.totalorder %s81, %s82
      %p91 = scmp.eq.s32.totalorder %s17, 0
      %p92 = por %p90, %p91
      %p93 = scmp.ne.s32.totalorder %s81, %s82
      %p94 = scmp.eq.s32.totalorder %s18, 1
      %p95 = por %p93, %p94
      %p97 = scmp.ne.s32.totalorder %s82, %s96
      %p98 = scmp.eq.s32.totalorder %s18, 0
      %p99 = por %p97, %p98
      %s100 = ssub.s32 %s19, %s31
      %p101 = scmp.eq.s32.totalorder %s100, 0
      %s103 = sadd.s32 %s102, 1
      %s104 = scalar_select %p101, %s102, %s103
      %p107 = pneg %p101
      %p108 = scmp.eq.s32.totalorder %s12, 1
      %p109 = por %p107, %p108
      %p110 = scmp.ne.s32.totalorder %s102, %s105
      %p111 = scmp.eq.s32.totalorder %s12, 0
      %p112 = por %p110, %p111
      %p113 = scmp.ne.s32.totalorder %s102, %s105
      %p114 = scmp.eq.s32.totalorder %s17, 1
      %p115 = por %p113, %p114
      %p116 = scmp.ne.s32.totalorder %s105, %s106
      %p117 = scmp.eq.s32.totalorder %s17, 0
      %p118 = por %p116, %p117
      %p119 = scmp.ne.s32.totalorder %s105, %s106
      %p120 = scmp.eq.s32.totalorder %s18, 1
      %p121 = por %p119, %p120
      %p123 = scmp.ne.s32.totalorder %s106, %s122
      %p124 = scmp.eq.s32.totalorder %s18, 0
      %p125 = por %p123, %p124
      %p126 = scmp.le.s32.totalorder 1, %s12
      %p127 = scmp.lt.s32.totalorder %s12, 3
      %p128 = pnand %p126, %p127
      %p129 = pneg %p128
      // Predicated region
      $region9: #{tpu_custom_call.1} parent=5 // pred_check
        _
      $region10: #{tpu_custom_call.1} parent=5 // pred_check_branch
        %131 = sbr.rel (%p128) target = $region12
      $region11: #{tpu_custom_call.1} parent=5 // pred_region
        %s132 = ssub.s32 %s12, 1
        // Predicated region
        $region13: #{tpu_custom_call.1} parent=11 // pred_check
          %p133 = pneg %p71
        $region14: #{tpu_custom_call.1} parent=11 // pred_check_branch
          %135 = sbr.rel (%p133) target = $region16
        $region15: #{tpu_custom_call.1} parent=11 // pred_region
          _
        $region16: #{tpu_custom_call.1} parent=11 // pred_fallthru
          _
        // Predicated region
        $region17: #{tpu_custom_call.1} parent=11 // pred_check
          %p136 = pneg %p92
        $region18: #{tpu_custom_call.1} parent=11 // pred_check_branch
          %138 = sbr.rel (%p136) target = $region20
        $region19: #{tpu_custom_call.1} parent=11 // pred_region
          _
        $region20: #{tpu_custom_call.1} parent=11 // pred_fallthru
          _
      $region12: #{tpu_custom_call.1} parent=5 // pred_fallthru
        _
      %p139 = scmp.lt.s32.totalorder %s12, 2
      // Predicated region
      $region21: #{tpu_custom_call.1} parent=5 // pred_check
        %p140 = pneg %p139
      $region22: #{tpu_custom_call.1} parent=5 // pred_check_branch
        %142 = sbr.rel (%p140) target = $region24
      $region23: #{tpu_custom_call.1} parent=5 // pred_region
        // Predicated region
        $region25: #{tpu_custom_call.1} parent=23 // pred_check
          %p143 = pneg %p44
        $region26: #{tpu_custom_call.1} parent=23 // pred_check_branch
          %145 = sbr.rel (%p143) target = $region28
        $region27: #{tpu_custom_call.1} parent=23 // pred_region
          %p146 = scmp.lt.s32.totalorder %s19, 1
          %s147 = scalar_select %p146, %s19, 1
          %s148 = smul.addr %s147, 8
          %s149 = scalar_lea.vmem %s0, %s148
        $region28: #{tpu_custom_call.1} parent=23 // pred_fallthru
          _
      $region24: #{tpu_custom_call.1} parent=5 // pred_fallthru
        _
      %p150 = scmp.le.s32.totalorder 1, %s12
      %p151 = scmp.lt.s32.totalorder %s12, 3
      %p152 = pnand %p150, %p151
      %p153 = pneg %p152
      // Predicated region
      $region29: #{tpu_custom_call.1} parent=5 // pred_check
        _
      $region30: #{tpu_custom_call.1} parent=5 // pred_check_branch
        %155 = sbr.rel (%p152) target = $region32
      $region31: #{tpu_custom_call.1} parent=5 // pred_region
        %s156 = ssub.s32 %s12, 1
        %p157 = scmp.lt.s32.totalorder %s21, 1
        %s158 = scalar_select %p157, %s21, 1
        %s159 = smul.addr %s158, 8
        %s160 = scalar_lea.vmem %s0, %s159
        %p161 = pneg %p50
        %p162 = pneg %p47
        %p163 = pneg %p71
        %p164 = pneg %p68
        %p165 = pneg %p92
        %p166 = pneg %p89
        %p167 = pneg %p118
        %p168 = pneg %p115
        %s169 = sand.u32 %s105, 1
        %s170 = scalar_lea.sflag [#allocation6], %s169
        %s171 = sand.u32 %s105, 1
        %s172 = smul.addr %s171, 8
        %s173 = scalar_lea.vmem [#allocation5], %s172
        %p174 = scmp.lt.s32.totalorder %s21, 1
        %s175 = scalar_select %p174, %s21, 1
        %s176 = smul.addr %s175, 8
        %s177 = scalar_lea.vmem %s0, %s176
        %p179 = scmp.eq.s32.totalorder %s21, 0
        %p180 = scmp.eq.s32.totalorder %s22, 0
        %p181 = pnand %p179, %p180
        %p182 = pneg %p181
        // Predicated region
        $region33: #{tpu_custom_call.1} parent=31 // pred_check
          _
        $region34: #{tpu_custom_call.1} parent=31 // pred_check_branch
          %184 = sbr.rel (%p181) target = $region36
        $region35: #{tpu_custom_call.1} parent=31 // pred_region
          %v185 = vlaneseq
          %v186 = vshrl.u32 %v185, 7
          %v187 = vadd.s32 %v186, 8
          %v188 = vadd.s32 %v186, 16
          %v189 = vadd.s32 %v186, 24
          %v190 = vadd.s32 %v186, 32
          %v191 = vadd.s32 %v186, 40
          %v192 = vadd.s32 %v186, 48
          %v193 = vadd.s32 %v186, 56
          %v194 = vadd.s32 %v186, 64
          %v195 = vadd.s32 %v186, 72
          %v196 = vadd.s32 %v186, 80
          %v197 = vadd.s32 %v186, 88
          %v198 = vadd.s32 %v186, 96
          %v199 = vadd.s32 %v186, 104
          %v200 = vadd.s32 %v186, 112
          %v201 = vadd.s32 %v186, 120
          %v202 = vlaneseq
          %v203 = vand.u32 %v202, 127
          %vm204 = vcmp.eq.s32.totalorder %v186, %v203
          %vm205 = vcmp.eq.s32.totalorder %v187, %v203
          %vm206 = vcmp.eq.s32.totalorder %v188, %v203
          %vm207 = vcmp.eq.s32.totalorder %v189, %v203
          %vm208 = vcmp.eq.s32.totalorder %v190, %v203
          %vm209 = vcmp.eq.s32.totalorder %v191, %v203
          %vm210 = vcmp.eq.s32.totalorder %v192, %v203
          %vm211 = vcmp.eq.s32.totalorder %v193, %v203
          %vm212 = vcmp.eq.s32.totalorder %v194, %v203
          %vm213 = vcmp.eq.s32.totalorder %v195, %v203
          %vm214 = vcmp.eq.s32.totalorder %v196, %v203
          %vm215 = vcmp.eq.s32.totalorder %v197, %v203
          %vm216 = vcmp.eq.s32.totalorder %v198, %v203
          %vm217 = vcmp.eq.s32.totalorder %v199, %v203
          %vm218 = vcmp.eq.s32.totalorder %v200, %v203
          %vm219 = vcmp.eq.s32.totalorder %v201, %v203
          %v220 = vsel %vm204, 1, 0
          %v221 = vsel %vm205, 1, 0
          %v222 = vsel %vm206, 1, 0
          %v223 = vsel %vm207, 1, 0
          %v224 = vsel %vm208, 1, 0
          %v225 = vsel %vm209, 1, 0
          %v226 = vsel %vm210, 1, 0
          %v227 = vsel %vm211, 1, 0
          %v228 = vsel %vm212, 1, 0
          %v229 = vsel %vm213, 1, 0
          %v230 = vsel %vm214, 1, 0
          %v231 = vsel %vm215, 1, 0
          %v232 = vsel %vm216, 1, 0
          %v233 = vsel %vm217, 1, 0
          %v234 = vsel %vm218, 1, 0
          %v235 = vsel %vm219, 1, 0
          %v236 = vcvt.s32.f32 %v220
          %v237 = vcvt.s32.f32 %v221
          %v238 = vcvt.s32.f32 %v222
          %v239 = vcvt.s32.f32 %v223
          %v240 = vcvt.s32.f32 %v224
          %v241 = vcvt.s32.f32 %v225
          %v242 = vcvt.s32.f32 %v226
          %v243 = vcvt.s32.f32 %v227
          %v244 = vcvt.s32.f32 %v228
          %v245 = vcvt.s32.f32 %v229
          %v246 = vcvt.s32.f32 %v230
          %v247 = vcvt.s32.f32 %v231
          %v248 = vcvt.s32.f32 %v232
          %v249 = vcvt.s32.f32 %v233
          %v250 = vcvt.s32.f32 %v234
          %v251 = vcvt.s32.f32 %v235
          %252 = vst [vmem:[#allocation4] sm:$0xff] %v236
          %253 = vst [vmem:[#allocation4 + $0x8] sm:$0xff] %v237
          %254 = vst [vmem:[#allocation4 + $0x10] sm:$0xff] %v238
          %255 = vst [vmem:[#allocation4 + $0x18] sm:$0xff] %v239
          %256 = vst [vmem:[#allocation4 + $0x20] sm:$0xff] %v240
          %257 = vst [vmem:[#allocation4 + $0x28] sm:$0xff] %v241
          %258 = vst [vmem:[#allocation4 + $0x30] sm:$0xff] %v242
          %259 = vst [vmem:[#allocation4 + $0x38] sm:$0xff] %v243
          %260 = vst [vmem:[#allocation4 + $0x40] sm:$0xff] %v244
          %261 = vst [vmem:[#allocation4 + $0x48] sm:$0xff] %v245
          %262 = vst [vmem:[#allocation4 + $0x50] sm:$0xff] %v246
          %263 = vst [vmem:[#allocation4 + $0x58] sm:$0xff] %v247
          %264 = vst [vmem:[#allocation4 + $0x60] sm:$0xff] %v248
          %265 = vst [vmem:[#allocation4 + $0x68] sm:$0xff] %v249
          %266 = vst [vmem:[#allocation4 + $0x70] sm:$0xff] %v250
          %267 = vst [vmem:[#allocation4 + $0x78] sm:$0xff] %v251
        $region36: #{tpu_custom_call.1} parent=31 // pred_fallthru
          _
        // Predicated region
        $region37: #{tpu_custom_call.1} parent=31 // pred_check
          %p268 = pneg %p180
        $region38: #{tpu_custom_call.1} parent=31 // pred_check_branch
          %270 = sbr.rel (%p268) target = $region40
        $region39: #{tpu_custom_call.1} parent=31 // pred_region
          %v271 = vld [vmem:[%s177] sm:$0xff]
          %v272 = vld [vmem:[%s1] sm:$0xff]
          %v273 = vld [vmem:[%s1 + $0x8] sm:$0xff]
          %v274 = vpack.c.bf16 %v273, %v272
          %v275 = vpack.c.bf16 %v271, %v271
          %v276 = vld [vmem:[%s2] sm:$0xff]
          %v277 = vld [vmem:[%s2 + $0x8] sm:$0xff]
          %279 = vset.pattern.permute.xlu0 0
          %280 = vperm.xlu0 %279, %v276
          %v281 = vpop.permute.xlu0 %280
          %284 = vset.pattern.permute.xlu0 0
          %285 = vperm.xlu0 %284, %v277
          %v286 = vpop.permute.xlu0 %285
          %vm288 = vcmask 64512
          %v290 = vsel %vm288, %v274, 0
          %vm292 = vcmask 1043456
          %v294 = vsel %vm292, %v275, 0
          %296 = vmatpush.bf16.msra.mxu0 0
          %297 = vmatpush.bf16.msra.mxu0 0
          %298 = vmatpush.bf16.msra.mxu0 0
          %299 = vmatpush.bf16.msra.mxu0 0
          %300 = vmatpush.bf16.msra.mxu0 0
          %301 = vmatpush.bf16.msra.mxu0 0
          %302 = vmatpush.bf16.msra.mxu0 0
          %303 = vmatpush.bf16.msra.mxu0 %v294
          %304 = vmatmul.bf16.gmra.mxu0 %v290
          %v305 = vpop.f32.mrf.mxu0
          %v306 = vadd.f32 %v281, %v305
          %v307 = vpop.f32.mrf.mxu0
          %v308 = vadd.f32 %v286, %v307
          %309 = vdwg.mxu0
          %v310 = vlaneseq
          %v311 = vand.u32 %v310, 127
          %vm312 = vcmp.lt.s32.totalorder %v311, 64
          %v313 = vsel %vm312, 1, 0
          %vm314 = vcmp.eq.s32.totalorder %v313, 1
          %v315 = vsel %vm314, %v306, 0.0
          %v316 = vsel %vm314, %v308, 0.0
          %v317 = vpack.c.bf16 %v315, %v315
          %318 = vst [vmem:[#allocation2] sm:$0xf] %v317
          %v319 = vmul.f32 %v316, 0.35355338
          %v320 = vpack.c.bf16 %v319, %v319
          %321 = vst [vmem:[#allocation3] sm:$0xf] %v320
          %v322 = vld [vmem:[#allocation2] sm:$0xf]
          %v323 = vld [vmem:[#allocation3] sm:$0xf]
          %324 = vmatpush.bf16.xpose.msra.mxu0 0
          %325 = vmatpush.bf16.xpose.msra.mxu0 0
          %326 = vmatpush.bf16.xpose.msra.mxu0 0
          %327 = vmatpush.bf16.xpose.msra.mxu0 0
          %328 = vmatpush.bf16.xpose.msra.mxu0 0
          %329 = vmatpush.bf16.xpose.msra.mxu0 0
          %330 = vmatpush.bf16.xpose.msra.mxu0 0
          %331 = vmatpush.bf16.xpose.msra.mxu0 %v323
          %332 = vmatmul.bf16.gmra.mxu0 %v322
          %v333 = vpop.f32.mrf.mxu0
          %v334 = vadd.f32 0.0, %v333
          %v335 = vpop.f32.mrf.mxu0
          %336 = vdwg.mxu0
          %v337 = vsel %vm288, %v334, -inf
          %338 = vmax.xlane.f32.xlu0 %v337
          %v339 = vpop.xlane.xlu0 %338
          %v340 = vsub.f32 %v334, %v339
          %v341 = vmul.f32 %v340, 1.442695
          %v342 = vpow.pop %v341
          %v343 = vsel %vm288, %v342, 0.0
          %344 = vadd.xlane.f32.xlu0 %v343
          %v345 = vpop.xlane.xlu0 %344
          %v346 = vrcp.pop %v345
          %v347 = vmul.f32 %v345, %v346
          %v348 = vsub.f32 1.0, %v347
          %v349 = vmul.f32 %v346, %v348
          %v350 = vadd.f32 %v346, %v349
          %vm351 = vweird.f32 %v345
          %vm352 = vweird.f32 %v346
          %vm353 = vmor %vm351, %vm352
          %v354 = vsel %vm353, %v346, %v350
          %v355 = vand.u32 2147483647, %v345
          %vm356 = vcmp.eq.f32.partialorder %v355, 8.507059e+37
          %v357 = vand.u32 %v345, 2147483648
          %v358 = vor.u32 1.1754944e-38, %v357
          %v359 = vsel %vm356, %v358, %v354
          %v360 = vmul.f32 %v342, %v359
          %v361 = vmul.f32 %v360, 2.828427
          %v362 = vpack.c.bf16 %v361, %v361
          %v364 = vsel %vm288, %v362, 0
          %v367 = vsel %vm292, %v323, 0
          %369 = vmatpush.bf16.msra.mxu0 0
          %370 = vmatpush.bf16.msra.mxu0 0
          %371 = vmatpush.bf16.msra.mxu0 0
          %372 = vmatpush.bf16.msra.mxu0 0
          %373 = vmatpush.bf16.msra.mxu0 0
          %374 = vmatpush.bf16.msra.mxu0 0
          %375 = vmatpush.bf16.msra.mxu0 0
          %376 = vmatpush.bf16.msra.mxu0 %v367
          %377 = vmatmul.bf16.gmra.mxu0 %v364
          %v378 = vpop.f32.mrf.mxu0
          %v379 = vadd.f32 %v271, %v378
          %v380 = vpop.f32.mrf.mxu0
          %381 = vdwg.mxu0
          %382 = vst [vmem:[%s173] sm:$0xff] %v379
        $region40: #{tpu_custom_call.1} parent=31 // pred_fallthru
          _
        %s383 = smul.u32 %s22, 128
        %s384 = sshra.s32 %s383, 7
        %s385 = sand.u32 %s383, 127
        %s386 = smul.addr %s384, 4
        %s387 = scalar_lea.vmem [#allocation3], %s386
        %v388 = vld [vmem:[%s387] sm:$0xf]
        %v389 = vld [vmem:[#allocation2] sm:$0xf]
        %390 = vxpose.xlu0.c.b16.start [1/8] %v388, 128
        %391 = vxpose.xlu0.c.b16.cont [2/8] 0, 128
        %392 = vxpose.xlu0.c.b16.cont [3/8] 0, 128
        %393 = vxpose.xlu0.c.b16.cont [4/8] 0, 128
        %394 = vxpose.xlu0.c.b16.cont [5/8] 0, 128
        %395 = vxpose.xlu0.c.b16.cont [6/8] 0, 128
        %396 = vxpose.xlu0.c.b16.cont [7/8] 0, 128
        %397 = vxpose.xlu0.c.b16.end [8/8] 0, 128
        %v398 = vpop.trf.xlu0
        %v399 = vpop.trf.xlu0
        %v400 = vpop.trf.xlu0
        %v401 = vpop.trf.xlu0
        %v402 = vpop.trf.xlu0
        %v403 = vpop.trf.xlu0
        %v404 = vpop.trf.xlu0
        %v405 = vpop.trf.xlu0
        %vm406 = vcmask 64512
        %v408 = vsel %vm406, %v398, 0
        %v411 = vsel %vm406, %v399, 0
        %v414 = vsel %vm406, %v400, 0
        %v417 = vsel %vm406, %v401, 0
        %v420 = vsel %vm406, %v402, 0
        %v423 = vsel %vm406, %v403, 0
        %v426 = vsel %vm406, %v404, 0
        %v429 = vsel %vm406, %v405, 0
        %vm431 = vcmask 1043456
        %v433 = vsel %vm431, %v389, 0
        %435 = vmatpush.bf16.msra.mxu0 0
        %436 = vmatpush.bf16.msra.mxu0 0
        %437 = vmatpush.bf16.msra.mxu0 0
        %438 = vmatpush.bf16.msra.mxu0 0
        %439 = vmatpush.bf16.msra.mxu0 0
        %440 = vmatpush.bf16.msra.mxu0 0
        %441 = vmatpush.bf16.msra.mxu0 0
        %442 = vmatpush.bf16.msra.mxu0 %v433
        %443 = vmatmul.bf16.gmra.mxu0 %v408
        %v444 = vpop.f32.mrf.mxu0
        %v445 = vadd.f32 0.0, %v444
        %v446 = vpop.f32.mrf.mxu0
        %v447 = vadd.f32 0.0, %v446
        %448 = vmatmul.bf16.gmra.mxu0 %v411
        %v449 = vpop.f32.mrf.mxu0
        %v450 = vadd.f32 0.0, %v449
        %v451 = vpop.f32.mrf.mxu0
        %v452 = vadd.f32 0.0, %v451
        %453 = vmatmul.bf16.gmra.mxu0 %v414
        %v454 = vpop.f32.mrf.mxu0
        %v455 = vadd.f32 0.0, %v454
        %v456 = vpop.f32.mrf.mxu0
        %v457 = vadd.f32 0.0, %v456
        %458 = vmatmul.bf16.gmra.mxu0 %v417
        %v459 = vpop.f32.mrf.mxu0
        %v460 = vadd.f32 0.0, %v459
        %v461 = vpop.f32.mrf.mxu0
        %v462 = vadd.f32 0.0, %v461
        %463 = vmatmul.bf16.gmra.mxu0 %v420
        %v464 = vpop.f32.mrf.mxu0
        %v465 = vadd.f32 0.0, %v464
        %v466 = vpop.f32.mrf.mxu0
        %v467 = vadd.f32 0.0, %v466
        %468 = vmatmul.bf16.gmra.mxu0 %v423
        %v469 = vpop.f32.mrf.mxu0
        %v470 = vadd.f32 0.0, %v469
        %v471 = vpop.f32.mrf.mxu0
        %v472 = vadd.f32 0.0, %v471
        %473 = vmatmul.bf16.gmra.mxu0 %v426
        %v474 = vpop.f32.mrf.mxu0
        %v475 = vadd.f32 0.0, %v474
        %v476 = vpop.f32.mrf.mxu0
        %v477 = vadd.f32 0.0, %v476
        %478 = vmatmul.bf16.gmra.mxu0 %v429
        %v479 = vpop.f32.mrf.mxu0
        %v480 = vadd.f32 0.0, %v479
        %v481 = vpop.f32.mrf.mxu0
        %v482 = vadd.f32 0.0, %v481
        %483 = vdwg.mxu0
        %484 = vmax.xlane.f32.xlu0 %v445
        %v485 = vpop.xlane.xlu0 %484
        %486 = vmax.xlane.f32.xlu0 %v447
        %v487 = vpop.xlane.xlu0 %486
        %488 = vmax.xlane.f32.xlu0 %v450
        %v489 = vpop.xlane.xlu0 %488
        %490 = vmax.xlane.f32.xlu0 %v452
        %v491 = vpop.xlane.xlu0 %490
        %492 = vmax.xlane.f32.xlu0 %v455
        %v493 = vpop.xlane.xlu0 %492
        %494 = vmax.xlane.f32.xlu0 %v457
        %v495 = vpop.xlane.xlu0 %494
        %496 = vmax.xlane.f32.xlu0 %v460
        %v497 = vpop.xlane.xlu0 %496
        %498 = vmax.xlane.f32.xlu0 %v462
        %v499 = vpop.xlane.xlu0 %498
        %500 = vmax.xlane.f32.xlu0 %v465
        %v501 = vpop.xlane.xlu0 %500
        %502 = vmax.xlane.f32.xlu0 %v467
        %v503 = vpop.xlane.xlu0 %502
        %504 = vmax.xlane.f32.xlu0 %v470
        %v505 = vpop.xlane.xlu0 %504
        %506 = vmax.xlane.f32.xlu0 %v472
        %v507 = vpop.xlane.xlu0 %506
        %508 = vmax.xlane.f32.xlu0 %v475
        %v509 = vpop.xlane.xlu0 %508
        %510 = vmax.xlane.f32.xlu0 %v477
        %v511 = vpop.xlane.xlu0 %510
        %512 = vmax.xlane.f32.xlu0 %v480
        %v513 = vpop.xlane.xlu0 %512
        %514 = vmax.xlane.f32.xlu0 %v482
        %v515 = vpop.xlane.xlu0 %514
        %v516 = vsub.f32 %v445, %v485
        %v517 = vsub.f32 %v447, %v487
        %v518 = vsub.f32 %v450, %v489
        %v519 = vsub.f32 %v452, %v491
        %v520 = vsub.f32 %v455, %v493
        %v521 = vsub.f32 %v457, %v495
        %v522 = vsub.f32 %v460, %v497
        %v523 = vsub.f32 %v462, %v499
        %v524 = vsub.f32 %v465, %v501
        %v525 = vsub.f32 %v467, %v503
        %v526 = vsub.f32 %v470, %v505
        %v527 = vsub.f32 %v472, %v507
        %v528 = vsub.f32 %v475, %v509
        %v529 = vsub.f32 %v477, %v511
        %v530 = vsub.f32 %v480, %v513
        %v531 = vsub.f32 %v482, %v515
        %v532 = vmul.f32 %v516, 1.442695
        %v533 = vpow.pop %v532
        %v534 = vmul.f32 %v517, 1.442695
        %v535 = vpow.pop %v534
        %v536 = vmul.f32 %v518, 1.442695
        %v537 = vpow.pop %v536
        %v538 = vmul.f32 %v519, 1.442695
        %v539 = vpow.pop %v538
        %v540 = vmul.f32 %v520, 1.442695
        %v541 = vpow.pop %v540
        %v542 = vmul.f32 %v521, 1.442695
        %v543 = vpow.pop %v542
        %v544 = vmul.f32 %v522, 1.442695
        %v545 = vpow.pop %v544
        %v546 = vmul.f32 %v523, 1.442695
        %v547 = vpow.pop %v546
        %v548 = vmul.f32 %v524, 1.442695
        %v549 = vpow.pop %v548
        %v550 = vmul.f32 %v525, 1.442695
        %v551 = vpow.pop %v550
        %v552 = vmul.f32 %v526, 1.442695
        %v553 = vpow.pop %v552
        %v554 = vmul.f32 %v527, 1.442695
        %v555 = vpow.pop %v554
        %v556 = vmul.f32 %v528, 1.442695
        %v557 = vpow.pop %v556
        %v558 = vmul.f32 %v529, 1.442695
        %v559 = vpow.pop %v558
        %v560 = vmul.f32 %v530, 1.442695
        %v561 = vpow.pop %v560
        %v562 = vmul.f32 %v531, 1.442695
        %v563 = vpow.pop %v562
        %564 = vadd.xlane.f32.xlu0 %v533
        %v565 = vpop.xlane.xlu0 %564
        %566 = vadd.xlane.f32.xlu0 %v535
        %v567 = vpop.xlane.xlu0 %566
        %568 = vadd.xlane.f32.xlu0 %v537
        %v569 = vpop.xlane.xlu0 %568
        %570 = vadd.xlane.f32.xlu0 %v539
        %v571 = vpop.xlane.xlu0 %570
        %572 = vadd.xlane.f32.xlu0 %v541
        %v573 = vpop.xlane.xlu0 %572
        %574 = vadd.xlane.f32.xlu0 %v543
        %v575 = vpop.xlane.xlu0 %574
        %576 = vadd.xlane.f32.xlu0 %v545
        %v577 = vpop.xlane.xlu0 %576
        %578 = vadd.xlane.f32.xlu0 %v547
        %v579 = vpop.xlane.xlu0 %578
        %580 = vadd.xlane.f32.xlu0 %v549
        %v581 = vpop.xlane.xlu0 %580
        %582 = vadd.xlane.f32.xlu0 %v551
        %v583 = vpop.xlane.xlu0 %582
        %584 = vadd.xlane.f32.xlu0 %v553
        %v585 = vpop.xlane.xlu0 %584
        %586 = vadd.xlane.f32.xlu0 %v555
        %v587 = vpop.xlane.xlu0 %586
        %588 = vadd.xlane.f32.xlu0 %v557
        %v589 = vpop.xlane.xlu0 %588
        %590 = vadd.xlane.f32.xlu0 %v559
        %v591 = vpop.xlane.xlu0 %590
        %592 = vadd.xlane.f32.xlu0 %v561
        %v593 = vpop.xlane.xlu0 %592
        %594 = vadd.xlane.f32.xlu0 %v563
        %v595 = vpop.xlane.xlu0 %594
        %v596 = vsub.f32 0.0, %v485
        %v597 = vsub.f32 0.0, %v487
        %v598 = vsub.f32 0.0, %v489
        %v599 = vsub.f32 0.0, %v491
        %v600 = vsub.f32 0.0, %v493
        %v601 = vsub.f32 0.0, %v495
        %v602 = vsub.f32 0.0, %v497
        %v603 = vsub.f32 0.0, %v499
        %v604 = vsub.f32 0.0, %v501
        %v605 = vsub.f32 0.0, %v503
        %v606 = vsub.f32 0.0, %v505
        %v607 = vsub.f32 0.0, %v507
        %v608 = vsub.f32 0.0, %v509
        %v609 = vsub.f32 0.0, %v511
        %v610 = vsub.f32 0.0, %v513
        %v611 = vsub.f32 0.0, %v515
        %v612 = vmul.f32 %v596, 1.442695
        %v613 = vpow.pop %v612
        %v614 = vmul.f32 %v597, 1.442695
        %v615 = vpow.pop %v614
        %v616 = vmul.f32 %v598, 1.442695
        %v617 = vpow.pop %v616
        %v618 = vmul.f32 %v599, 1.442695
        %v619 = vpow.pop %v618
        %v620 = vmul.f32 %v600, 1.442695
        %v621 = vpow.pop %v620
        %v622 = vmul.f32 %v601, 1.442695
        %v623 = vpow.pop %v622
        %v624 = vmul.f32 %v602, 1.442695
        %v625 = vpow.pop %v624
        %v626 = vmul.f32 %v603, 1.442695
        %v627 = vpow.pop %v626
        %v628 = vmul.f32 %v604, 1.442695
        %v629 = vpow.pop %v628
        %v630 = vmul.f32 %v605, 1.442695
        %v631 = vpow.pop %v630
        %v632 = vmul.f32 %v606, 1.442695
        %v633 = vpow.pop %v632
        %v634 = vmul.f32 %v607, 1.442695
        %v635 = vpow.pop %v634
        %v636 = vmul.f32 %v608, 1.442695
        %v637 = vpow.pop %v636
        %v638 = vmul.f32 %v609, 1.442695
        %v639 = vpow.pop %v638
        %v640 = vmul.f32 %v610, 1.442695
        %v641 = vpow.pop %v640
        %v642 = vmul.f32 %v611, 1.442695
        %v643 = vpow.pop %v642
        %v644 = vmul.f32 %v613, 64.0
        %v645 = vmul.f32 %v615, 64.0
        %v646 = vmul.f32 %v617, 64.0
        %v647 = vmul.f32 %v619, 64.0
        %v648 = vmul.f32 %v621, 64.0
        %v649 = vmul.f32 %v623, 64.0
        %v650 = vmul.f32 %v625, 64.0
        %v651 = vmul.f32 %v627, 64.0
        %v652 = vmul.f32 %v629, 64.0
        %v653 = vmul.f32 %v631, 64.0
        %v654 = vmul.f32 %v633, 64.0
        %v655 = vmul.f32 %v635, 64.0
        %v656 = vmul.f32 %v637, 64.0
        %v657 = vmul.f32 %v639, 64.0
        %v658 = vmul.f32 %v641, 64.0
        %v659 = vmul.f32 %v643, 64.0
        %v660 = vsub.f32 %v565, %v644
        %v661 = vsub.f32 %v567, %v645
        %v662 = vsub.f32 %v569, %v646
        %v663 = vsub.f32 %v571, %v647
        %v664 = vsub.f32 %v573, %v648
        %v665 = vsub.f32 %v575, %v649
        %v666 = vsub.f32 %v577, %v650
        %v667 = vsub.f32 %v579, %v651
        %v668 = vsub.f32 %v581, %v652
        %v669 = vsub.f32 %v583, %v653
        %v670 = vsub.f32 %v585, %v654
        %v671 = vsub.f32 %v587, %v655
        %v672 = vsub.f32 %v589, %v656
        %v673 = vsub.f32 %v591, %v657
        %v674 = vsub.f32 %v593, %v658
        %v675 = vsub.f32 %v595, %v659
        %v676 = vmax.f32 %v660, 1e-30
        %v677 = vmax.f32 %v661, 1e-30
        %v678 = vmax.f32 %v662, 1e-30
        %v679 = vmax.f32 %v663, 1e-30
        %v680 = vmax.f32 %v664, 1e-30
        %v681 = vmax.f32 %v665, 1e-30
        %v682 = vmax.f32 %v666, 1e-30
        %v683 = vmax.f32 %v667, 1e-30
        %v684 = vmax.f32 %v668, 1e-30
        %v685 = vmax.f32 %v669, 1e-30
        %v686 = vmax.f32 %v670, 1e-30
        %v687 = vmax.f32 %v671, 1e-30
        %v688 = vmax.f32 %v672, 1e-30
        %v689 = vmax.f32 %v673, 1e-30
        %v690 = vmax.f32 %v674, 1e-30
        %v691 = vmax.f32 %v675, 1e-30
        %v692 = vld [vmem:[#allocation4] sm:$0xff]
        %v693 = vld [vmem:[#allocation4 + $0x8] sm:$0xff]
        %v694 = vld [vmem:[#allocation4 + $0x10] sm:$0xff]
        %v695 = vld [vmem:[#allocation4 + $0x18] sm:$0xff]
        %v696 = vld [vmem:[#allocation4 + $0x20] sm:$0xff]
        %v697 = vld [vmem:[#allocation4 + $0x28] sm:$0xff]
        %v698 = vld [vmem:[#allocation4 + $0x30] sm:$0xff]
        %v699 = vld [vmem:[#allocation4 + $0x38] sm:$0xff]
        %v700 = vld [vmem:[#allocation4 + $0x40] sm:$0xff]
        %v701 = vld [vmem:[#allocation4 + $0x48] sm:$0xff]
        %v702 = vld [vmem:[#allocation4 + $0x50] sm:$0xff]
        %v703 = vld [vmem:[#allocation4 + $0x58] sm:$0xff]
        %v704 = vld [vmem:[#allocation4 + $0x60] sm:$0xff]
        %v705 = vld [vmem:[#allocation4 + $0x68] sm:$0xff]
        %v706 = vld [vmem:[#allocation4 + $0x70] sm:$0xff]
        %v707 = vld [vmem:[#allocation4 + $0x78] sm:$0xff]
        %708 = vxpose.xlu0.b32.start [1/16] %v676, 128
        %709 = vxpose.xlu0.b32.cont [2/16] %v677, 128
        %710 = vxpose.xlu0.b32.cont [3/16] %v678, 128
        %711 = vxpose.xlu0.b32.cont [4/16] %v679, 128
        %712 = vxpose.xlu0.b32.cont [5/16] %v680, 128
        %713 = vxpose.xlu0.b32.cont [6/16] %v681, 128
        %714 = vxpose.xlu0.b32.cont [7/16] %v682, 128
        %715 = vxpose.xlu0.b32.cont [8/16] %v683, 128
        %716 = vxpose.xlu0.b32.cont [9/16] %v684, 128
        %717 = vxpose.xlu0.b32.cont [10/16] %v685, 128
        %718 = vxpose.xlu0.b32.cont [11/16] %v686, 128
        %719 = vxpose.xlu0.b32.cont [12/16] %v687, 128
        %720 = vxpose.xlu0.b32.cont [13/16] %v688, 128
        %721 = vxpose.xlu0.b32.cont [14/16] %v689, 128
        %722 = vxpose.xlu0.b32.cont [15/16] %v690, 128
        %723 = vxpose.xlu0.b32.end [16/16] %v691, 128
        %v724 = vpop.trf.xlu0
        %v725 = vpop.trf.xlu0
        %v726 = vpop.trf.xlu0
        %v727 = vpop.trf.xlu0
        %v728 = vpop.trf.xlu0
        %v729 = vpop.trf.xlu0
        %v730 = vpop.trf.xlu0
        %v731 = vpop.trf.xlu0
        %v732 = vpop.trf.xlu0
        %v733 = vpop.trf.xlu0
        %v734 = vpop.trf.xlu0
        %v735 = vpop.trf.xlu0
        %v736 = vpop.trf.xlu0
        %v737 = vpop.trf.xlu0
        %v738 = vpop.trf.xlu0
        %v739 = vpop.trf.xlu0
        %740 = vmatpush.msra.mxu0 %v707
        %741 = vmatpush.msra.mxu0 %v706
        %742 = vmatpush.msra.mxu0 %v705
        %743 = vmatpush.msra.mxu0 %v704
        %744 = vmatpush.msra.mxu0 %v703
        %745 = vmatpush.msra.mxu0 %v702
        %746 = vmatpush.msra.mxu0 %v701
        %747 = vmatpush.msra.mxu0 %v700
        %748 = vmatpush.msra.mxu0 %v699
        %749 = vmatpush.msra.mxu0 %v698
        %750 = vmatpush.msra.mxu0 %v697
        %751 = vmatpush.msra.mxu0 %v696
        %752 = vmatpush.msra.mxu0 %v695
        %753 = vmatpush.msra.mxu0 %v694
        %754 = vmatpush.msra.mxu0 %v693
        %755 = vmatpush.msra.mxu0 %v692
        %756 = vmatmul.f32.gmra.mxu0 %v724
        %v757 = vpop.f32.mrf.mxu0
        %v758 = vadd.f32 0.0, %v757
        %759 = vdwg.mxu0
        %v760 = vrcp.pop %v758
        %s761 = smul.addr %s384, 4
        %s762 = scalar_lea.vmem [#allocation2], %s761
        %v763 = vld [vmem:[%s762] sm:$0xf]
        %v764 = vunpack.c.l.bf16 %v763
        %v765 = vperm.slane %v760, 0
        %v766 = vmul.f32 %v764, %v765
        %v767 = vpack.c.bf16 %v766, %v766
        %v768 = vpack.c.bf16 %v535, %v533
        %v769 = vpack.c.bf16 %v539, %v537
        %v770 = vpack.c.bf16 %v543, %v541
        %v771 = vpack.c.bf16 %v547, %v545
        %v772 = vpack.c.bf16 %v551, %v549
        %v773 = vpack.c.bf16 %v555, %v553
        %v774 = vpack.c.bf16 %v559, %v557
        %v775 = vpack.c.bf16 %v563, %v561
        %776 = vmatpush.bf16.msra.mxu0 %v775
        %777 = vmatpush.bf16.msra.mxu0 %v774
        %778 = vmatpush.bf16.msra.mxu0 %v773
        %779 = vmatpush.bf16.msra.mxu0 %v772
        %780 = vmatpush.bf16.msra.mxu0 %v771
        %781 = vmatpush.bf16.msra.mxu0 %v770
        %782 = vmatpush.bf16.msra.mxu0 %v769
        %783 = vmatpush.bf16.msra.mxu0 %v768
        %784 = vmatmul.bf16.gmra.mxu0 %v767
        %v785 = vpop.f32.mrf.mxu0
        %v786 = vadd.f32 0.0, %v785
        %v787 = vpop.f32.mrf.mxu0
        %788 = vdwg.mxu0
        %v789 = vld [vmem:[%s173] sm:$0xff]
        %v790 = vadd.f32 %v789, %v786
        %791 = vst [vmem:[%s173] sm:$0xff] %v790
        %s792 = sand.u32 %s105, 1
        %s793 = scalar_lea.sflag [#allocation6], %s792
        %s794 = sand.u32 %s105, 1
        %s795 = smul.addr %s794, 8
        %s796 = scalar_lea.vmem [#allocation5], %s795
        // Predicated region
        $region41: #{tpu_custom_call.1} parent=31 // pred_check
          %p797 = pneg %p115
        $region42: #{tpu_custom_call.1} parent=31 // pred_check_branch
          %799 = sbr.rel (%p797) target = $region44
        $region43: #{tpu_custom_call.1} parent=31 // pred_region
          %801 = vsyncadd %s793, 0
          %s802 = smul.addr %s21, 8
          %s803 = scalar_lea.hbm %s3, %s802
          %s805 = sshll.u32 %s796, 4
          %s806 = int_to_ptr.vmem [resolvable:$true] %s805
          %s807 = sshll.u32 %s803, 4
          %s808 = int_to_ptr.hbm [resolvable:$true] %s807
          %810 = dma.vmem_to_hbm [thread:$0]  %s806, 128, %s808, %s793
        $region44: #{tpu_custom_call.1} parent=31 // pred_fallthru
          _
      $region32: #{tpu_custom_call.1} parent=5 // pred_fallthru
        _
      %p811 = scmp.le.s32.totalorder 2, %s12
      // Predicated region
      $region45: #{tpu_custom_call.1} parent=5 // pred_check
        %p812 = pneg %p811
      $region46: #{tpu_custom_call.1} parent=5 // pred_check_branch
        %814 = sbr.rel (%p812) target = $region48
      $region47: #{tpu_custom_call.1} parent=5 // pred_region
        %s815 = ssub.s32 %s12, 2
        // Predicated region
        $region49: #{tpu_custom_call.1} parent=47 // pred_check
          %p816 = pneg %p121
        $region50: #{tpu_custom_call.1} parent=47 // pred_check_branch
          %818 = sbr.rel (%p816) target = $region52
        $region51: #{tpu_custom_call.1} parent=47 // pred_region
          %s819 = sand.u32 %s106, 1
          %s820 = scalar_lea.sflag [#allocation6], %s819
          %s821 = sand.u32 %s106, 1
          %s822 = smul.addr %s821, 8
          %s823 = scalar_lea.vmem [#allocation5], %s822
          %825 = dma.done %s820, 128
        $region52: #{tpu_custom_call.1} parent=47 // pred_fallthru
          _
      $region48: #{tpu_custom_call.1} parent=5 // pred_fallthru
        _
    $region6: #{tpu_custom_call.1} parent=1 // loop_footer
      %s16 = sadd.s32 1, %s12
    $region7: #{tpu_custom_call.1} parent=1 // loop_footer_branch
      %11 = sbr.rel target = $region3
    $region8: #{tpu_custom_call.1} parent=1 // loop_exit
      _
    %826 = vsyncpa [#allocation6], 1
    %s827 = scalar_lea.sflag [#allocation6], 1
    %828 = vsyncpa %s827, 1

</llo_original>
